<compile_context>
chip_gen: v5e
topology: v5e:2x2
jax: 0.10.0
libtpu: 0.0.40
codegen_flags: <defaults>
</compile_context>

<pallas_src>
import functools
import math

import numpy as np
import jax
import jax.numpy as jnp
from jax import lax
from jax.experimental import pallas as pl
from jax.experimental.pallas import tpu as pltpu


def _as_pair(v):
    if isinstance(v, (int, float)):
        return [v, v]
    v = list(v)
    assert len(v) == 2
    return v


def make_gaussian_taps_1d(kernel_size, sigma):
    """Normalized 1D Gaussian taps (Python floats), matching the torch per-dim factor."""
    xs = np.arange(kernel_size, dtype=np.float32)
    mean = (kernel_size - 1) / 2.0
    k = (1.0 / (sigma * math.sqrt(2.0 * math.pi))) * np.exp(
        -(((xs - mean) / sigma) ** 2) / 2.0
    )
    k = k / k.sum()
    return [float(v) for v in k]


def make_gaussian_weight(channels, kernel_size, sigma, dim=2, dtype=jnp.float32):
    """Replicates GaussianSmoothing.__init__ weight construction (dim=2): (C, K, K)."""
    if isinstance(kernel_size, (int, float)):
        kernel_size = [int(kernel_size)] * dim
    if isinstance(sigma, (int, float)):
        sigma = [float(sigma)] * dim
    grids = jnp.meshgrid(
        *[jnp.arange(s, dtype=jnp.float32) for s in kernel_size], indexing="ij"
    )
    kernel = jnp.ones((), dtype=jnp.float32)
    for size, std, mgrid in zip(kernel_size, sigma, grids):
        mean = (size - 1) / 2.0
        kernel = kernel * (
            1.0 / (std * math.sqrt(2 * math.pi))
            * jnp.exp(-(((mgrid - mean) / std) ** 2) / 2.0)
        )
    kernel = kernel / jnp.sum(kernel)
    kernel = jnp.broadcast_to(kernel[None, :, :], (channels,) + kernel.shape)
    return kernel.astype(dtype)


def _gauss_sep_kernel(x_ref, o_ref, *, taps_h, taps_w, Ho, Wo):
    """Separable depthwise Gaussian on one (cb, H, W) block -> (cb, Ho, Wo).

    Taps are compile-time Python-float scalars (identical for every channel).
    H pass: K shifted windows are loaded directly from the Ref, so the sublane
    offsets ride on vld addressing (vld has slack: 3 loads/cycle) instead of
    XLU sublane shifts.  W pass: lane-direction shifts on the in-vreg value
    (XLU lane rotates), 2K total VPU MACs per output element, f32 accumulation.
    """
    # Pass 1: K-tap filter along H (sublane axis), read straight from the Ref.
    acc_h = x_ref[:, 0:Ho, :].astype(jnp.float32) * taps_h[0]
    for i in range(1, len(taps_h)):
        acc_h = acc_h + x_ref[:, i:i + Ho, :].astype(jnp.float32) * taps_h[i]

    # Pass 2: K-tap filter along W (lane axis) on the already-resident value.
    acc = acc_h[:, :, 0:Wo] * taps_w[0]
    for j in range(1, len(taps_w)):
        acc = acc + acc_h[:, :, j:j + Wo] * taps_w[j]

    o_ref[...] = acc.astype(o_ref.dtype)


def _choose_block_channels(NC, per_channel_block_bytes, target_bytes=2 << 20):
    """Largest divisor of NC whose double-buffered in+out block fits the target,
    preferring an even grid length >= 2 (v7x megacore sharding)."""
    divisors = [d for d in range(1, NC + 1) if NC % d == 0]
    fitting = [d for d in divisors if d * per_channel_block_bytes <= target_bytes] or [1]
    even_grid = [d for d in fitting if (NC // d) >= 2 and (NC // d) % 2 == 0]
    return max(even_grid) if even_grid else max(fitting)


def gaussian_smoothing(x, kernel_size, sigma, *, block_channels=None):
    """Depthwise 'valid' Gaussian blur: x (N,C,H,W) -> (N, C, H-Kh+1, W-Kw+1)."""
    N, C, H, W = x.shape
    Kh, Kw = (int(k) for k in _as_pair(kernel_size))
    sh, sw = (float(s) for s in _as_pair(sigma))
    assert H >= Kh and W >= Kw
    Ho, Wo = H - Kh + 1, W - Kw + 1

    # 1D taps; the module's 2D weight == outer(taps_h, taps_w) exactly
    # (the 2D normalizer factorizes because sum(outer) = sum_h * sum_w).
    taps_h = make_gaussian_taps_1d(Kh, sh)
    taps_w = make_gaussian_taps_1d(Kw, sw)

    NC = N * C
    itemsize = jnp.dtype(x.dtype).itemsize
    if block_channels is None:
        # Double-buffered input block + output block per channel-plane.
        per_ch = 2 * (H * W + Ho * Wo) * itemsize
        block_channels = _choose_block_channels(NC, per_ch)
    cb = block_channels
    assert NC % cb == 0, "block_channels must divide N*C"

    # Metadata-only reshape (contiguous leading-dim merge) — no HBM traffic.
    x_flat = x.reshape(NC, H, W)

    kernel = functools.partial(
        _gauss_sep_kernel, taps_h=taps_h, taps_w=taps_w, Ho=Ho, Wo=Wo
    )

    out = pl.pallas_call(
        kernel,
        out_shape=jax.ShapeDtypeStruct((NC, Ho, Wo), x.dtype),
        grid_spec=pltpu.PrefetchScalarGridSpec(
            num_scalar_prefetch=0,
            grid=(NC // cb,),
            # Trailing block dims equal the full array dims -> exempt from the
            # (8,128) divisibility rule; no wrapper-side padding needed.
            in_specs=[pl.BlockSpec((cb, H, W), lambda n: (n, 0, 0))],
            out_specs=pl.BlockSpec((cb, Ho, Wo), lambda n: (n, 0, 0)),
        ),
        compiler_params=pltpu.CompilerParams(
            # Depthwise conv: the flattened N*C axis is embarrassingly parallel
            # -> shards across v7x's 2 TensorCores; no-op on v5e/v6e.
            dimension_semantics=("parallel",),
            # Raise v5e's 16 MiB default scoped VMEM; matches v6e/v7x defaults
            # and stays well within v7x's 64 MiB physical budget (blocks are
            # capped at ~2 MiB double-buffered by _choose_block_channels).
            vmem_limit_bytes=32 * 1024 * 1024,
        ),
    )(x_flat)

    # Metadata-only reshape back to NCHW — no slice, no extra HBM pass.
    return out.reshape(N, C, Ho, Wo)


def _reference(x, weight):
    # pure-JAX reference: depthwise conv2d, groups=C, no padding (torch F.conv2d)
    C = x.shape[1]
    w = weight[:, None, :, :]  # (C, 1, K, K) == torch (O, I/groups, K, K)
    return lax.conv_general_dilated(
        x, w, window_strides=(1, 1), padding="VALID",
        dimension_numbers=("NCHW", "OIHW", "NCHW"),
        feature_group_count=C,
    )


if __name__ == "__main__":
    N, C, H, W = 2, 4, 16, 16
    K, sigma = 5, 2.0

    key = jax.random.PRNGKey(0)
    x = jax.random.normal(key, (N, C, H, W), dtype=jnp.float32)

    out = gaussian_smoothing(x, K, sigma)
    out = jax.block_until_ready(out)

    weight = make_gaussian_weight(C, K, sigma, dim=2)
    ref = _reference(x, weight)

    assert out.shape == (N, C, H - K + 1, W - K + 1), out.shape
    assert jnp.allclose(out, ref, atol=1e-5, rtol=1e-5), "mismatch vs reference"

    print("KERNEL_OK")
</pallas_src>

<mosaic_0001>
module attributes {stable_mosaic.version = 11 : i64} {
  func.func @_gauss_sep_kernel(%arg0: i32, %arg1: memref<4x16x16xf32, #tpu.memory_space<vmem>>, %arg2: memref<4x12x12xf32, #tpu.memory_space<vmem>>) attributes {dimension_semantics = [#tpu.dimension_semantics<parallel>], iteration_bounds = array<i64: 2>, scalar_prefetch = 0 : i64, scratch_operands = 0 : i64, tpu.core_type = #tpu.core_type<tc>, window_params = [{transform_indices = @transform_0, window_bounds = array<i64: 4, 16, 16>}, {transform_indices = @transform_1, window_bounds = array<i64: 4, 12, 12>}]} {
    %c0 = arith.constant 0 : index
    %c0_0 = arith.constant 0 : index
    %c0_1 = arith.constant 0 : index
    %0 = vector.load %arg1[%c0, %c0_0, %c0_1] : memref<4x16x16xf32, #tpu.memory_space<vmem>>, vector<4x12x16xf32>
    %cst = arith.constant 0.152469143 : f32
    %1 = vector.broadcast %cst : f32 to vector<4x12x16xf32>
    %2 = arith.mulf %0, %1 : vector<4x12x16xf32>
    %c0_2 = arith.constant 0 : index
    %c1 = arith.constant 1 : index
    %c0_3 = arith.constant 0 : index
    %3 = vector.load %arg1[%c0_2, %c1, %c0_3] : memref<4x16x16xf32, #tpu.memory_space<vmem>>, vector<4x12x16xf32>
    %cst_4 = arith.constant 0.221841291 : f32
    %4 = vector.broadcast %cst_4 : f32 to vector<4x12x16xf32>
    %5 = arith.mulf %3, %4 : vector<4x12x16xf32>
    %6 = arith.addf %2, %5 : vector<4x12x16xf32>
    %c0_5 = arith.constant 0 : index
    %c2 = arith.constant 2 : index
    %c0_6 = arith.constant 0 : index
    %7 = vector.load %arg1[%c0_5, %c2, %c0_6] : memref<4x16x16xf32, #tpu.memory_space<vmem>>, vector<4x12x16xf32>
    %cst_7 = arith.constant 0.251379132 : f32
    %8 = vector.broadcast %cst_7 : f32 to vector<4x12x16xf32>
    %9 = arith.mulf %7, %8 : vector<4x12x16xf32>
    %10 = arith.addf %6, %9 : vector<4x12x16xf32>
    %c0_8 = arith.constant 0 : index
    %c3 = arith.constant 3 : index
    %c0_9 = arith.constant 0 : index
    %11 = vector.load %arg1[%c0_8, %c3, %c0_9] : memref<4x16x16xf32, #tpu.memory_space<vmem>>, vector<4x12x16xf32>
    %cst_10 = arith.constant 0.221841291 : f32
    %12 = vector.broadcast %cst_10 : f32 to vector<4x12x16xf32>
    %13 = arith.mulf %11, %12 : vector<4x12x16xf32>
    %14 = arith.addf %10, %13 : vector<4x12x16xf32>
    %c0_11 = arith.constant 0 : index
    %c4 = arith.constant 4 : index
    %c0_12 = arith.constant 0 : index
    %15 = vector.load %arg1[%c0_11, %c4, %c0_12] : memref<4x16x16xf32, #tpu.memory_space<vmem>>, vector<4x12x16xf32>
    %cst_13 = arith.constant 0.152469143 : f32
    %16 = vector.broadcast %cst_13 : f32 to vector<4x12x16xf32>
    %17 = arith.mulf %15, %16 : vector<4x12x16xf32>
    %18 = arith.addf %14, %17 : vector<4x12x16xf32>
    %19 = vector.extract_strided_slice %18 {offsets = [0, 0, 0], sizes = [4, 12, 12], strides = [1, 1, 1]} : vector<4x12x16xf32> to vector<4x12x12xf32>
    %cst_14 = arith.constant 0.152469143 : f32
    %20 = vector.broadcast %cst_14 : f32 to vector<4x12x12xf32>
    %21 = arith.mulf %19, %20 : vector<4x12x12xf32>
    %22 = vector.extract_strided_slice %18 {offsets = [0, 0, 1], sizes = [4, 12, 12], strides = [1, 1, 1]} : vector<4x12x16xf32> to vector<4x12x12xf32>
    %cst_15 = arith.constant 0.221841291 : f32
    %23 = vector.broadcast %cst_15 : f32 to vector<4x12x12xf32>
    %24 = arith.mulf %22, %23 : vector<4x12x12xf32>
    %25 = arith.addf %21, %24 : vector<4x12x12xf32>
    %26 = vector.extract_strided_slice %18 {offsets = [0, 0, 2], sizes = [4, 12, 12], strides = [1, 1, 1]} : vector<4x12x16xf32> to vector<4x12x12xf32>
    %cst_16 = arith.constant 0.251379132 : f32
    %27 = vector.broadcast %cst_16 : f32 to vector<4x12x12xf32>
    %28 = arith.mulf %26, %27 : vector<4x12x12xf32>
    %29 = arith.addf %25, %28 : vector<4x12x12xf32>
    %30 = vector.extract_strided_slice %18 {offsets = [0, 0, 3], sizes = [4, 12, 12], strides = [1, 1, 1]} : vector<4x12x16xf32> to vector<4x12x12xf32>
    %cst_17 = arith.constant 0.221841291 : f32
    %31 = vector.broadcast %cst_17 : f32 to vector<4x12x12xf32>
    %32 = arith.mulf %30, %31 : vector<4x12x12xf32>
    %33 = arith.addf %29, %32 : vector<4x12x12xf32>
    %34 = vector.extract_strided_slice %18 {offsets = [0, 0, 4], sizes = [4, 12, 12], strides = [1, 1, 1]} : vector<4x12x16xf32> to vector<4x12x12xf32>
    %cst_18 = arith.constant 0.152469143 : f32
    %35 = vector.broadcast %cst_18 : f32 to vector<4x12x12xf32>
    %36 = arith.mulf %34, %35 : vector<4x12x12xf32>
    %37 = arith.addf %33, %36 : vector<4x12x12xf32>
    %c0_19 = arith.constant 0 : index
    %c0_20 = arith.constant 0 : index
    %c0_21 = arith.constant 0 : index
    %38 = vector.load %arg2[%c0_19, %c0_20, %c0_21] : memref<4x12x12xf32, #tpu.memory_space<vmem>>, vector<4x12x12xf32>
    tpu.vector_store %arg2[%c0_19, %c0_20, %c0_21], %37 {strides = array<i32>} : memref<4x12x12xf32, #tpu.memory_space<vmem>>, vector<4x12x12xf32>,
    return
  }
  func.func @transform_0(%arg0: i32) -> (i32, i32, i32) {
    %c0_i32 = arith.constant 0 : i32
    %c0_i32_0 = arith.constant 0 : i32
    %c0_i32_1 = arith.constant 0 : i32
    return %arg0, %c0_i32, %c0_i32_0 : i32, i32, i32
  }
  func.func @transform_1(%arg0: i32) -> (i32, i32, i32) {
    %c0_i32 = arith.constant 0 : i32
    %c0_i32_0 = arith.constant 0 : i32
    %c0_i32_1 = arith.constant 0 : i32
    return %arg0, %c0_i32, %c0_i32_0 : i32, i32, i32
  }
}

</mosaic_0001>

<llo_original>
// kernel: tpu_custom_call.1
$region0: #{tpu_custom_call.1}
  #allocation0 [shape = 'u32[]', space=smem, size = 0x4, offset = 0x4, fixed_abs, tag = 'smem constant byte address 0x4 - core index']
  #allocation1 [shape = 'u32[72,128]{1,0:T(1,128)}', space=vmem, size = 0x9000, scoped, tag = 'internal scratch']
  %s0 = inlined_call_operand.hbm [shape: f32[8,16,16], index: 0, kind: input, shape index: {}]
  %s1 = inlined_call_operand.vmem [shape: f32[8,12,12], index: 1, kind: output, shape index: {}]
  %s2 = sld [smem:[#allocation0]]
  $region41: #{tpu_custom_call.1} parent=0
    _
  %s4 = ssub.s32 1, %s2
  %s5 = scalar_select 0, %s4, %s2
  $region1: #{tpu_custom_call.1} parent=0
    #allocation2 [shape = 'u8[65536]{0}', space=vmem, size = 0x10000, scoped, tag = 'input window, operand 0']
    #allocation3 [shape = 's32[2]{0}', space=sflag, size = 0x8, scoped, tag = 'scoped memory for tpu_custom_call.1']
    %6 = vsyncpa [#allocation3], 0
    %s7 = scalar_lea.sflag [#allocation3], 1
    %8 = vsyncpa %s7, 0
    loop: start=0, step=1, limit=4
    $region2: #{tpu_custom_call.1} parent=1 // loop_pre_header
      _
    $region3: #{tpu_custom_call.1} parent=1 // loop_header
      %s10 = sphi 0, %s14
      %p11 = scmp.ge.s32.totalorder %s10, 4
      %s20 = sphi 0, %s22
      %s23 = sphi 0, %s20
      %s24 = sphi 0, %s23
      %s40 = sphi 0, %s24
      %s46 = sphi 0, %s48
      %s49 = sphi 0, %s46
      %s50 = sphi 0, %s49
      %s66 = sphi 0, %s50
    $region4: #{tpu_custom_call.1} parent=1 // loop_header_branch
      %13 = sbr.rel (%p11) target = $region8
    $region5: #{tpu_custom_call.1} parent=1 // loop_body
      %s15 = ssub.s32 %s10, 1
      %s16 = ssub.s32 %s10, 2
      %s17 = sadd.s32 %s10, 1
      %s18 = ssub.s32 %s10, %s17
      %p19 = scmp.eq.s32.totalorder %s18, 0
      %s21 = sadd.s32 %s20, 1
      %s22 = scalar_select %p19, %s20, %s21
      %p25 = pneg %p19
      %p26 = scmp.eq.s32.totalorder %s10, 1
      %p27 = por %p25, %p26
      %p28 = scmp.ne.s32.totalorder %s20, %s23
      %p29 = scmp.eq.s32.totalorder %s10, 0
      %p30 = por %p28, %p29
      %p31 = scmp.ne.s32.totalorder %s20, %s23
      %p32 = scmp.eq.s32.totalorder %s15, 1
      %p33 = por %p31, %p32
      %p34 = scmp.ne.s32.totalorder %s23, %s24
      %p35 = scmp.eq.s32.totalorder %s15, 0
      %p36 = por %p34, %p35
      %p37 = scmp.ne.s32.totalorder %s23, %s24
      %p38 = scmp.eq.s32.totalorder %s16, 1
      %p39 = por %p37, %p38
      %p41 = scmp.ne.s32.totalorder %s24, %s40
      %p42 = scmp.eq.s32.totalorder %s16, 0
      %p43 = por %p41, %p42
      %s44 = ssub.s32 %s10, %s17
      %p45 = scmp.eq.s32.totalorder %s44, 0
      %s47 = sadd.s32 %s46, 1
      %s48 = scalar_select %p45, %s46, %s47
      %p51 = pneg %p45
      %p52 = scmp.eq.s32.totalorder %s10, 1
      %p53 = por %p51, %p52
      %p54 = scmp.ne.s32.totalorder %s46, %s49
      %p55 = scmp.eq.s32.totalorder %s10, 0
      %p56 = por %p54, %p55
      %p57 = scmp.ne.s32.totalorder %s46, %s49
      %p58 = scmp.eq.s32.totalorder %s15, 1
      %p59 = por %p57, %p58
      %p60 = scmp.ne.s32.totalorder %s49, %s50
      %p61 = scmp.eq.s32.totalorder %s15, 0
      %p62 = por %p60, %p61
      %p63 = scmp.ne.s32.totalorder %s49, %s50
      %p64 = scmp.eq.s32.totalorder %s16, 1
      %p65 = por %p63, %p64
      %p67 = scmp.ne.s32.totalorder %s50, %s66
      %p68 = scmp.eq.s32.totalorder %s16, 0
      %p69 = por %p67, %p68
      %p70 = scmp.le.s32.totalorder 1, %s10
      %p71 = scmp.lt.s32.totalorder %s10, 3
      %p72 = pnand %p70, %p71
      %p73 = pneg %p72
      // Predicated region
      $region9: #{tpu_custom_call.1} parent=5 // pred_check
        _
      $region10: #{tpu_custom_call.1} parent=5 // pred_check_branch
        %75 = sbr.rel (%p72) target = $region12
      $region11: #{tpu_custom_call.1} parent=5 // pred_region
        %s76 = ssub.s32 %s10, 1
      $region12: #{tpu_custom_call.1} parent=5 // pred_fallthru
        _
      %p77 = scmp.lt.s32.totalorder %s10, 2
      // Predicated region
      $region13: #{tpu_custom_call.1} parent=5 // pred_check
        %p78 = pneg %p77
      $region14: #{tpu_custom_call.1} parent=5 // pred_check_branch
        %80 = sbr.rel (%p78) target = $region16
      $region15: #{tpu_custom_call.1} parent=5 // pred_region
        // Predicated region
        $region17: #{tpu_custom_call.1} parent=15 // pred_check
          %p81 = pneg %p30
        $region18: #{tpu_custom_call.1} parent=15 // pred_check_branch
          %83 = sbr.rel (%p81) target = $region20
        $region19: #{tpu_custom_call.1} parent=15 // pred_region
          %s84 = sand.u32 %s20, 1
          %s85 = scalar_lea.sflag [#allocation3], %s84
          %s86 = sand.u32 %s20, 1
          %s87 = smul.addr %s86, 64
          %s88 = scalar_lea.vmem [#allocation2], %s87
          %s89 = smul.u32 4, %s10
          %91 = vsyncadd %s85, 0
          %s92 = smul.addr %s89, 2
          %s93 = smul.addr %s92, 8
          %s94 = scalar_lea.hbm %s0, %s93
          %s95 = sshll.u32 %s94, 4
          %s96 = int_to_ptr.hbm [resolvable:$true] %s95
          %s97 = sshll.u32 %s88, 4
          %s98 = int_to_ptr.vmem [resolvable:$true] %s97
          %103 = dma.hbm_to_vmem [thread:$0]  %s96, 1024, %s98, %s85, 128, 128, 8
        $region20: #{tpu_custom_call.1} parent=15 // pred_fallthru
          _
      $region16: #{tpu_custom_call.1} parent=5 // pred_fallthru
        _
      %p104 = scmp.le.s32.totalorder 1, %s10
      %p105 = scmp.lt.s32.totalorder %s10, 3
      %p106 = pnand %p104, %p105
      %p107 = pneg %p106
      // Predicated region
      $region21: #{tpu_custom_call.1} parent=5 // pred_check
        _
      $region22: #{tpu_custom_call.1} parent=5 // pred_check_branch
        %109 = sbr.rel (%p106) target = $region24
      $region23: #{tpu_custom_call.1} parent=5 // pred_region
        %s110 = ssub.s32 %s10, 1
        %s111 = sand.u32 %s23, 1
        %s112 = scalar_lea.sflag [#allocation3], %s111
        %s113 = sand.u32 %s23, 1
        %s114 = smul.addr %s113, 64
        %s115 = scalar_lea.vmem [#allocation2], %s114
        // Predicated region
        $region25: #{tpu_custom_call.1} parent=23 // pred_check
          %p116 = pneg %p36
        $region26: #{tpu_custom_call.1} parent=23 // pred_check_branch
          %118 = sbr.rel (%p116) target = $region28
        $region27: #{tpu_custom_call.1} parent=23 // pred_region
          %120 = dma.done %s112, 1024
        $region28: #{tpu_custom_call.1} parent=23 // pred_fallthru
          _
        %s121 = sand.u32 %s23, 1
        %s122 = scalar_lea.sflag [#allocation3], %s121
        %s123 = sand.u32 %s23, 1
        %s124 = smul.addr %s123, 64
        %s125 = scalar_lea.vmem [#allocation2], %s124
        %p126 = pneg %p36
        %p127 = pneg %p33
        %p128 = pneg %p62
        %p129 = pneg %p59
        %s130 = smul.u32 4, %s15
        %p131 = scmp.lt.s32.totalorder %s130, 7
        %s132 = scalar_select %p131, %s130, 7
        %s133 = smul.addr %s132, 2
        %s134 = smul.addr %s133, 8
        %s135 = scalar_lea.vmem %s1, %s134
        %s136 = smul.u32 4, %s15
        %s137 = smul.u32 4, %s15
        %p138 = scmp.lt.s32.totalorder %s137, 7
        %s139 = scalar_select %p138, %s137, 7
        %s140 = smul.addr %s139, 2
        %s141 = smul.addr %s140, 8
        %s142 = scalar_lea.vmem %s1, %s141
        %s143 = smul.u32 4, %s15
        %v144 = vld [vmem:[%s115] sm:$0xff]
        %v145 = vld [vmem:[%s115 + $0x8] sm:$0xf]
        %v146 = vld [vmem:[%s115 + $0x10] sm:$0xff]
        %v147 = vld [vmem:[%s115 + $0x18] sm:$0xf]
        %v148 = vld [vmem:[%s115 + $0x20] sm:$0xff]
        %v149 = vld [vmem:[%s115 + $0x28] sm:$0xf]
        %v150 = vld [vmem:[%s115 + $0x30] sm:$0xff]
        %v151 = vld [vmem:[%s115 + $0x38] sm:$0xf]
        %v152 = vmul.f32 %v144, 0.15246914
        %v153 = vmul.f32 %v145, 0.15246914
        %v154 = vmul.f32 %v146, 0.15246914
        %v155 = vmul.f32 %v147, 0.15246914
        %v156 = vmul.f32 %v148, 0.15246914
        %v157 = vmul.f32 %v149, 0.15246914
        %v158 = vmul.f32 %v150, 0.15246914
        %v159 = vmul.f32 %v151, 0.15246914
        %v160 = vld [vmem:[%s115 + $0x1] sm:$0xff]
        %v161 = vld [vmem:[%s115 + $0x9] sm:$0xf]
        %v162 = vld [vmem:[%s115 + $0x11] sm:$0xff]
        %v163 = vld [vmem:[%s115 + $0x19] sm:$0xf]
        %v164 = vld [vmem:[%s115 + $0x21] sm:$0xff]
        %v165 = vld [vmem:[%s115 + $0x29] sm:$0xf]
        %v166 = vld [vmem:[%s115 + $0x31] sm:$0xff]
        %v167 = vld [vmem:[%s115 + $0x39] sm:$0xf]
        %v168 = vmul.f32 %v160, 0.22184129
        %v169 = vmul.f32 %v161, 0.22184129
        %v170 = vmul.f32 %v162, 0.22184129
        %v171 = vmul.f32 %v163, 0.22184129
        %v172 = vmul.f32 %v164, 0.22184129
        %v173 = vmul.f32 %v165, 0.22184129
        %v174 = vmul.f32 %v166, 0.22184129
        %v175 = vmul.f32 %v167, 0.22184129
        %v176 = vadd.f32 %v152, %v168
        %v177 = vadd.f32 %v153, %v169
        %v178 = vadd.f32 %v154, %v170
        %v179 = vadd.f32 %v155, %v171
        %v180 = vadd.f32 %v156, %v172
        %v181 = vadd.f32 %v157, %v173
        %v182 = vadd.f32 %v158, %v174
        %v183 = vadd.f32 %v159, %v175
        %v184 = vld [vmem:[%s115 + $0x2] sm:$0xff]
        %v185 = vld [vmem:[%s115 + $0xa] sm:$0xf]
        %v186 = vld [vmem:[%s115 + $0x12] sm:$0xff]
        %v187 = vld [vmem:[%s115 + $0x1a] sm:$0xf]
        %v188 = vld [vmem:[%s115 + $0x22] sm:$0xff]
        %v189 = vld [vmem:[%s115 + $0x2a] sm:$0xf]
        %v190 = vld [vmem:[%s115 + $0x32] sm:$0xff]
        %v191 = vld [vmem:[%s115 + $0x3a] sm:$0xf]
        %v192 = vmul.f32 %v184, 0.25137913
        %v193 = vmul.f32 %v185, 0.25137913
        %v194 = vmul.f32 %v186, 0.25137913
        %v195 = vmul.f32 %v187, 0.25137913
        %v196 = vmul.f32 %v188, 0.25137913
        %v197 = vmul.f32 %v189, 0.25137913
        %v198 = vmul.f32 %v190, 0.25137913
        %v199 = vmul.f32 %v191, 0.25137913
        %v200 = vadd.f32 %v176, %v192
        %v201 = vadd.f32 %v177, %v193
        %v202 = vadd.f32 %v178, %v194
        %v203 = vadd.f32 %v179, %v195
        %v204 = vadd.f32 %v180, %v196
        %v205 = vadd.f32 %v181, %v197
        %v206 = vadd.f32 %v182, %v198
        %v207 = vadd.f32 %v183, %v199
        %v208 = vld [vmem:[%s115 + $0x3] sm:$0xff]
        %v209 = vld [vmem:[%s115 + $0xb] sm:$0xf]
        %v210 = vld [vmem:[%s115 + $0x13] sm:$0xff]
        %v211 = vld [vmem:[%s115 + $0x1b] sm:$0xf]
        %v212 = vld [vmem:[%s115 + $0x23] sm:$0xff]
        %v213 = vld [vmem:[%s115 + $0x2b] sm:$0xf]
        %v214 = vld [vmem:[%s115 + $0x33] sm:$0xff]
        %v215 = vld [vmem:[%s115 + $0x3b] sm:$0xf]
        %v216 = vmul.f32 %v208, 0.22184129
        %v217 = vmul.f32 %v209, 0.22184129
        %v218 = vmul.f32 %v210, 0.22184129
        %v219 = vmul.f32 %v211, 0.22184129
        %v220 = vmul.f32 %v212, 0.22184129
        %v221 = vmul.f32 %v213, 0.22184129
        %v222 = vmul.f32 %v214, 0.22184129
        %v223 = vmul.f32 %v215, 0.22184129
        %v224 = vadd.f32 %v200, %v216
        %v225 = vadd.f32 %v201, %v217
        %v226 = vadd.f32 %v202, %v218
        %v227 = vadd.f32 %v203, %v219
        %v228 = vadd.f32 %v204, %v220
        %v229 = vadd.f32 %v205, %v221
        %v230 = vadd.f32 %v206, %v222
        %v231 = vadd.f32 %v207, %v223
        %v232 = vld [vmem:[%s115 + $0x4] sm:$0xff]
        %v233 = vld [vmem:[%s115 + $0xc] sm:$0xf]
        %v234 = vld [vmem:[%s115 + $0x14] sm:$0xff]
        %v235 = vld [vmem:[%s115 + $0x1c] sm:$0xf]
        %v236 = vld [vmem:[%s115 + $0x24] sm:$0xff]
        %v237 = vld [vmem:[%s115 + $0x2c] sm:$0xf]
        %v238 = vld [vmem:[%s115 + $0x34] sm:$0xff]
        %v239 = vld [vmem:[%s115 + $0x3c] sm:$0xf]
        %v240 = vmul.f32 %v232, 0.15246914
        %v241 = vmul.f32 %v233, 0.15246914
        %v242 = vmul.f32 %v234, 0.15246914
        %v243 = vmul.f32 %v235, 0.15246914
        %v244 = vmul.f32 %v236, 0.15246914
        %v245 = vmul.f32 %v237, 0.15246914
        %v246 = vmul.f32 %v238, 0.15246914
        %v247 = vmul.f32 %v239, 0.15246914
        %v248 = vadd.f32 %v224, %v240
        %v249 = vadd.f32 %v225, %v241
        %v250 = vadd.f32 %v226, %v242
        %v251 = vadd.f32 %v227, %v243
        %v252 = vadd.f32 %v228, %v244
        %v253 = vadd.f32 %v229, %v245
        %v254 = vadd.f32 %v230, %v246
        %v255 = vadd.f32 %v231, %v247
        %v256 = vmul.f32 %v248, 0.15246914
        %v257 = vmul.f32 %v249, 0.15246914
        %v258 = vmul.f32 %v250, 0.15246914
        %v259 = vmul.f32 %v251, 0.15246914
        %v260 = vmul.f32 %v252, 0.15246914
        %v261 = vmul.f32 %v253, 0.15246914
        %v262 = vmul.f32 %v254, 0.15246914
        %v263 = vmul.f32 %v255, 0.15246914
        %v264 = vmul.f32 %v248, 0.22184129
        %v265 = vmul.f32 %v249, 0.22184129
        %v266 = vmul.f32 %v250, 0.22184129
        %v267 = vmul.f32 %v251, 0.22184129
        %v268 = vmul.f32 %v252, 0.22184129
        %v269 = vmul.f32 %v253, 0.22184129
        %v270 = vmul.f32 %v254, 0.22184129
        %v271 = vmul.f32 %v255, 0.22184129
        %280 = vrot.lane.b32.xlu0 %v264, 127
        %v281 = vpop.permute.xlu0 %280
        %282 = vrot.lane.b32.xlu0 %v265, 127
        %v283 = vpop.permute.xlu0 %282
        %284 = vrot.lane.b32.xlu0 %v266, 127
        %v285 = vpop.permute.xlu0 %284
        %286 = vrot.lane.b32.xlu0 %v267, 127
        %v287 = vpop.permute.xlu0 %286
        %288 = vrot.lane.b32.xlu0 %v268, 127
        %v289 = vpop.permute.xlu0 %288
        %290 = vrot.lane.b32.xlu0 %v269, 127
        %v291 = vpop.permute.xlu0 %290
        %292 = vrot.lane.b32.xlu0 %v270, 127
        %v293 = vpop.permute.xlu0 %292
        %294 = vrot.lane.b32.xlu0 %v271, 127
        %v295 = vpop.permute.xlu0 %294
        %v304 = vadd.f32 %v256, %v281
        %v305 = vadd.f32 %v257, %v283
        %v306 = vadd.f32 %v258, %v285
        %v307 = vadd.f32 %v259, %v287
        %v308 = vadd.f32 %v260, %v289
        %v309 = vadd.f32 %v261, %v291
        %v310 = vadd.f32 %v262, %v293
        %v311 = vadd.f32 %v263, %v295
        %v312 = vmul.f32 %v248, 0.25137913
        %v313 = vmul.f32 %v249, 0.25137913
        %v314 = vmul.f32 %v250, 0.25137913
        %v315 = vmul.f32 %v251, 0.25137913
        %v316 = vmul.f32 %v252, 0.25137913
        %v317 = vmul.f32 %v253, 0.25137913
        %v318 = vmul.f32 %v254, 0.25137913
        %v319 = vmul.f32 %v255, 0.25137913
        %328 = vrot.lane.b32.xlu0 %v312, 126
        %v329 = vpop.permute.xlu0 %328
        %330 = vrot.lane.b32.xlu0 %v313, 126
        %v331 = vpop.permute.xlu0 %330
        %332 = vrot.lane.b32.xlu0 %v314, 126
        %v333 = vpop.permute.xlu0 %332
        %334 = vrot.lane.b32.xlu0 %v315, 126
        %v335 = vpop.permute.xlu0 %334
        %336 = vrot.lane.b32.xlu0 %v316, 126
        %v337 = vpop.permute.xlu0 %336
        %338 = vrot.lane.b32.xlu0 %v317, 126
        %v339 = vpop.permute.xlu0 %338
        %340 = vrot.lane.b32.xlu0 %v318, 126
        %v341 = vpop.permute.xlu0 %340
        %342 = vrot.lane.b32.xlu0 %v319, 126
        %v343 = vpop.permute.xlu0 %342
        %v352 = vadd.f32 %v304, %v329
        %v353 = vadd.f32 %v305, %v331
        %v354 = vadd.f32 %v306, %v333
        %v355 = vadd.f32 %v307, %v335
        %v356 = vadd.f32 %v308, %v337
        %v357 = vadd.f32 %v309, %v339
        %v358 = vadd.f32 %v310, %v341
        %v359 = vadd.f32 %v311, %v343
        %360 = vrot.lane.b32.xlu0 %v264, 125
        %v361 = vpop.permute.xlu0 %360
        %362 = vrot.lane.b32.xlu0 %v265, 125
        %v363 = vpop.permute.xlu0 %362
        %364 = vrot.lane.b32.xlu0 %v266, 125
        %v365 = vpop.permute.xlu0 %364
        %366 = vrot.lane.b32.xlu0 %v267, 125
        %v367 = vpop.permute.xlu0 %366
        %368 = vrot.lane.b32.xlu0 %v268, 125
        %v369 = vpop.permute.xlu0 %368
        %370 = vrot.lane.b32.xlu0 %v269, 125
        %v371 = vpop.permute.xlu0 %370
        %372 = vrot.lane.b32.xlu0 %v270, 125
        %v373 = vpop.permute.xlu0 %372
        %374 = vrot.lane.b32.xlu0 %v271, 125
        %v375 = vpop.permute.xlu0 %374
        %v384 = vadd.f32 %v352, %v361
        %v385 = vadd.f32 %v353, %v363
        %v386 = vadd.f32 %v354, %v365
        %v387 = vadd.f32 %v355, %v367
        %v388 = vadd.f32 %v356, %v369
        %v389 = vadd.f32 %v357, %v371
        %v390 = vadd.f32 %v358, %v373
        %v391 = vadd.f32 %v359, %v375
        %400 = vrot.lane.b32.xlu0 %v256, 124
        %v401 = vpop.permute.xlu0 %400
        %402 = vrot.lane.b32.xlu0 %v257, 124
        %v403 = vpop.permute.xlu0 %402
        %404 = vrot.lane.b32.xlu0 %v258, 124
        %v405 = vpop.permute.xlu0 %404
        %406 = vrot.lane.b32.xlu0 %v259, 124
        %v407 = vpop.permute.xlu0 %406
        %408 = vrot.lane.b32.xlu0 %v260, 124
        %v409 = vpop.permute.xlu0 %408
        %410 = vrot.lane.b32.xlu0 %v261, 124
        %v411 = vpop.permute.xlu0 %410
        %412 = vrot.lane.b32.xlu0 %v262, 124
        %v413 = vpop.permute.xlu0 %412
        %414 = vrot.lane.b32.xlu0 %v263, 124
        %v415 = vpop.permute.xlu0 %414
        %v424 = vadd.f32 %v384, %v401
        %v425 = vadd.f32 %v385, %v403
        %v426 = vadd.f32 %v386, %v405
        %v427 = vadd.f32 %v387, %v407
        %v428 = vadd.f32 %v388, %v409
        %v429 = vadd.f32 %v389, %v411
        %v430 = vadd.f32 %v390, %v413
        %v431 = vadd.f32 %v391, %v415
        %vm432 = vcmask 97280
        %433 = vst.msk [vmem:[%s142] sm:$0xff] %vm432, %v424
        %vm434 = vcmask 93184
        %435 = vst.msk [vmem:[%s142 + $0x8] sm:$0xf] %vm434, %v425
        %436 = vst.msk [vmem:[%s142 + $0x10] sm:$0xff] %vm432, %v426
        %437 = vst.msk [vmem:[%s142 + $0x18] sm:$0xf] %vm434, %v427
        %438 = vst.msk [vmem:[%s142 + $0x20] sm:$0xff] %vm432, %v428
        %439 = vst.msk [vmem:[%s142 + $0x28] sm:$0xf] %vm434, %v429
        %440 = vst.msk [vmem:[%s142 + $0x30] sm:$0xff] %vm432, %v430
        %441 = vst.msk [vmem:[%s142 + $0x38] sm:$0xf] %vm434, %v431
        %s442 = smul.u32 4, %s15
        %p443 = scmp.lt.s32.totalorder %s442, 7
        %s444 = scalar_select %p443, %s442, 7
        %s445 = smul.addr %s444, 2
        %s446 = smul.addr %s445, 8
        %s447 = scalar_lea.vmem %s1, %s446
        // Predicated region
        $region29: #{tpu_custom_call.1} parent=23 // pred_check
          %p448 = pneg %p59
        $region30: #{tpu_custom_call.1} parent=23 // pred_check_branch
          %450 = sbr.rel (%p448) target = $region32
        $region31: #{tpu_custom_call.1} parent=23 // pred_region
          %s451 = smul.u32 4, %s15
        $region32: #{tpu_custom_call.1} parent=23 // pred_fallthru
          _
      $region24: #{tpu_custom_call.1} parent=5 // pred_fallthru
        _
      %p452 = scmp.le.s32.totalorder 2, %s10
      // Predicated region
      $region33: #{tpu_custom_call.1} parent=5 // pred_check
        %p453 = pneg %p452
      $region34: #{tpu_custom_call.1} parent=5 // pred_check_branch
        %455 = sbr.rel (%p453) target = $region36
      $region35: #{tpu_custom_call.1} parent=5 // pred_region
        %s456 = ssub.s32 %s10, 2
        // Predicated region
        $region37: #{tpu_custom_call.1} parent=35 // pred_check
          %p457 = pneg %p65
        $region38: #{tpu_custom_call.1} parent=35 // pred_check_branch
          %459 = sbr.rel (%p457) target = $region40
        $region39: #{tpu_custom_call.1} parent=35 // pred_region
          %s460 = smul.u32 4, %s16
          %p461 = scmp.lt.s32.totalorder %s460, 7
          %s462 = scalar_select %p461, %s460, 7
          %s463 = smul.addr %s462, 2
          %s464 = smul.addr %s463, 8
          %s465 = scalar_lea.vmem %s1, %s464
        $region40: #{tpu_custom_call.1} parent=35 // pred_fallthru
          _
      $region36: #{tpu_custom_call.1} parent=5 // pred_fallthru
        _
    $region6: #{tpu_custom_call.1} parent=1 // loop_footer
      %s14 = sadd.s32 1, %s10
    $region7: #{tpu_custom_call.1} parent=1 // loop_footer_branch
      %9 = sbr.rel target = $region3
    $region8: #{tpu_custom_call.1} parent=1 // loop_exit
      _
    %466 = vsyncpa [#allocation3], 1
    %s467 = scalar_lea.sflag [#allocation3], 1
    %468 = vsyncpa %s467, 1

</llo_original>
